<compile_context>
chip_gen: v5e
topology: v5e:2x2
jax: 0.10.0
libtpu: 0.0.40
codegen_flags: <defaults>
</compile_context>

<pallas_src>
import functools

import numpy as np
import jax
import jax.numpy as jnp
from jax.experimental import pallas as pl
from jax.experimental.pallas import tpu as pltpu


# -----------------------------------------------------------------------------
# Pallas kernel: separable bilinear sampling for one (batch, m-tile) step.
# Factor tiles are built in-kernel from the continuous coordinates:
#   Ax[x, m] = bilinear weight of image column x for output m   (<=2 taps/col)
#   Ay[y, m] = bilinear weight of image row    y for output m
# then
#   out[c, m] = sum_y Ay[y, m] * ( sum_x img[c, y, x] * Ax[x, m] )
# The x-contraction is a single bf16 MXU matmul over the flattened (C*H, W)
# image; the y-contraction is one f32 VPU multiply + sublane reduction.
# -----------------------------------------------------------------------------
def _factor_tile(p, size, wrap):
    """p: (1, TM) f32 continuous coordinate in index units along an axis of
    length `size`.  Returns (size, TM) f32 with <=2 nonzeros per column.
    Out-of-range taps are zeroed (grid_sample zeros padding) unless wrap=True
    (angular wrap-around)."""
    tm = p.shape[-1]
    p0 = jnp.floor(p)
    p1 = p0 + 1.0
    w1 = p - p0
    w0 = 1.0 - w1
    iota = jax.lax.broadcasted_iota(jnp.int32, (size, tm), 0)   # row index

    def tap(pi, wgt):
        if wrap:
            idx = jnp.mod(pi, float(size)).astype(jnp.int32)          # (1, TM)
            wv = wgt
        else:
            valid = (pi >= 0.0) & (pi <= float(size - 1))
            idx = jnp.clip(pi, 0.0, float(size - 1)).astype(jnp.int32)
            wv = jnp.where(valid, wgt, 0.0)
        hit = (iota == idx).astype(jnp.float32)                       # (size, TM)
        return hit * wv

    return tap(p0, w0) + tap(p1, w1)


def _separable_sample_kernel(img_ref, py_ref, px_ref, o_ref, *, wrap_y, wrap_x):
    # img_ref: (1, C*H, W) bf16    py_ref/px_ref: (1, 1, TM) f32
    # o_ref:   (1, C, TM) f32
    c = o_ref.shape[1]
    w = img_ref.shape[2]
    h = img_ref.shape[1] // c
    tm = o_ref.shape[2]

    px = px_ref[0]                                   # (1, TM)
    py = py_ref[0]                                   # (1, TM)

    ax = _factor_tile(px, w, wrap_x).astype(jnp.bfloat16)   # (W, TM) MXU RHS
    ay = _factor_tile(py, h, wrap_y)                          # (H, TM) f32 VPU

    # MXU: (C*H, W) @ (W, TM) with f32 accumulation.
    t = jnp.dot(img_ref[0], ax, preferred_element_type=jnp.float32)  # (C*H, TM)
    # VPU: one broadcast multiply + one sublane reduction over the y axis.
    t3 = t.reshape(c, h, tm)
    o_ref[0] = jnp.sum(t3 * ay[None, :, :], axis=1)                  # (C, TM)


def _round_up(a, b):
    return ((a + b - 1) // b) * b


def _pick_tile_m(mp, tile_m_max):
    """Largest 128-multiple divisor of mp that is <= tile_m_max."""
    q = mp // 128
    best = 1
    for d in range(1, q + 1):
        if q % d == 0 and d * 128 <= tile_m_max:
            best = d
    return best * 128


def separable_sample_coords(img, py, px, *, wrap_y=False, wrap_x=False,
                            tile_m_max=2048):
    """out[b,c,m] = bilinear sample of img at (py[b,m], px[b,m]) (index units).

    img: (B, C, H, W) f32; py: (B, M); px: (B, M) -> (B, C, M) f32.
    Only the thin coordinate streams travel over HBM; the bilinear factor
    tiles are built inside the kernel.  The m axis is tiled into lane-dense
    128-multiples that divide the (padded) M exactly.
    """
    B, C, H, W = img.shape
    M = px.shape[-1]
    Mp = _round_up(M, 128)
    tm = _pick_tile_m(Mp, tile_m_max)
    if Mp != M:  # pad coordinates; padded output columns are sliced off below
        pad = Mp - M
        px = jnp.pad(px, ((0, 0), (0, pad)))
        py = jnp.pad(py, ((0, 0), (0, pad)))

    px = px.reshape(B, 1, Mp).astype(jnp.float32)
    py = py.reshape(B, 1, Mp).astype(jnp.float32)
    img2 = img.reshape(B, C * H, W).astype(jnp.bfloat16)   # MXU-native LHS

    kernel = functools.partial(_separable_sample_kernel,
                               wrap_y=wrap_y, wrap_x=wrap_x)

    out = pl.pallas_call(
        kernel,
        out_shape=jax.ShapeDtypeStruct((B, C, Mp), jnp.float32),
        grid_spec=pltpu.PrefetchScalarGridSpec(
            num_scalar_prefetch=0,
            grid=(B, Mp // tm),
            in_specs=[
                # image block index is constant across the m axis -> Pallas
                # keeps it resident (no re-DMA per m-tile); ~75 KB at 112x112.
                pl.BlockSpec((1, C * H, W), lambda b, m: (b, 0, 0)),
                # thin coordinate streams, (1,1,tm) blocks.
                pl.BlockSpec((1, 1, tm), lambda b, m: (b, 0, m)),
                pl.BlockSpec((1, 1, tm), lambda b, m: (b, 0, m)),
            ],
            out_specs=pl.BlockSpec((1, C, tm), lambda b, m: (b, 0, m)),
        ),
        compiler_params=pltpu.CompilerParams(
            dimension_semantics=("parallel", "parallel")),
    )(img2, py, px)
    return out[:, :, :M]


# -----------------------------------------------------------------------------
# Pure-JAX reference of the same sampler (for correctness checks only).
# -----------------------------------------------------------------------------
def _axis_factor_ref(p, size, wrap=False):
    dtype = p.dtype
    p0 = jnp.floor(p)
    p1 = p0 + 1.0
    w1 = p - p0
    w0 = 1.0 - w1
    axis_idx = jnp.arange(size, dtype=jnp.int32)[None, :, None]   # (1, size, 1)

    def tap(pi, wgt):
        if wrap:
            idx = jnp.mod(pi, size).astype(jnp.int32)
            wv = wgt
        else:
            valid = (pi >= 0) & (pi <= size - 1)
            idx = jnp.clip(pi, 0, size - 1).astype(jnp.int32)
            wv = wgt * valid.astype(dtype)
        hit = (axis_idx == idx[:, None, :]).astype(dtype)          # (B, size, M)
        return hit * wv[:, None, :]

    return tap(p0, w0) + tap(p1, w1)


def _separable_sample_ref(img, py, px, *, wrap_y=False, wrap_x=False):
    B, C, H, W = img.shape
    ay = _axis_factor_ref(py, H, wrap_y)
    ax = _axis_factor_ref(px, W, wrap_x)
    return jnp.einsum('bchw,bhm,bwm->bcm', img, ay, ax)


# -----------------------------------------------------------------------------
# Glue (plain JAX): sampling grids for the retina and its fixed inverse.
# -----------------------------------------------------------------------------
def _log_polar_grid(l_t, weight_s, weight_r, r_min, r_max, rH, rW,
                    r_base, log_r=True):
    """Sample positions of the retinal (log-polar) grid in [-1,1] coords.
    l_t: (B, 2) = (x, y) glimpse center."""
    if log_r:
        radii = jnp.exp(jnp.linspace(np.log(r_min), np.log(r_max), rH))
    else:
        radii = jnp.linspace(r_min, r_max, rH)
    radii = radii[None, :] * (r_base * weight_s)[:, None]             # (B, rH)
    theta = (jnp.arange(rW, dtype=jnp.float32) * (2.0 * np.pi / rW))[None, :]
    theta = theta + weight_r[:, None]                                  # (B, rW)
    sx = l_t[:, 0:1, None] + radii[:, :, None] * jnp.cos(theta[:, None, :])
    sy = l_t[:, 1:2, None] + radii[:, :, None] * jnp.sin(theta[:, None, :])
    B = l_t.shape[0]
    return sx.reshape(B, rH * rW), sy.reshape(B, rH * rW)


def _inverse_coords(l_t, r_min, r_max, rH, rW, imH, imW, log_r=True):
    """Continuous retinal-grid coordinates (radial u in [0, rH-1], angular v in
    [0, rW)) for every Cartesian output pixel.  Returns u, v: (B, imH*imW)."""
    jj, ii = jnp.meshgrid(jnp.arange(imW, dtype=jnp.float32),
                          jnp.arange(imH, dtype=jnp.float32))
    x_n = 2.0 * jj / (imW - 1) - 1.0
    y_n = 2.0 * ii / (imH - 1) - 1.0
    dx = x_n[None] - l_t[:, 0, None, None]
    dy = y_n[None] - l_t[:, 1, None, None]
    rr = jnp.sqrt(dx * dx + dy * dy) + 1e-8
    theta = jnp.mod(jnp.arctan2(dy, dx), 2.0 * np.pi)
    if log_r:
        u = (jnp.log(rr) - np.log(r_min)) / (np.log(r_max) - np.log(r_min))
    else:
        u = (rr - r_min) / (r_max - r_min)
    u = u * (rH - 1)
    v = theta / (2.0 * np.pi) * rW
    return u.reshape(l_t.shape[0], -1), v.reshape(l_t.shape[0], -1)


# -----------------------------------------------------------------------------
# The module
# -----------------------------------------------------------------------------
class RetinalScale2Large11:
    def __init__(self, r_min=0.05, r_max=0.8, image_H=112, image_W=112,
                 retinal_H=112, retinal_W=112, log_r=True, channel=1, r=0.5,
                 w_scale=1.0, w_rotation=2.0 * np.pi, key=None):
        self.r_min, self.r_max = float(r_min), float(r_max)
        self.image_H, self.image_W = image_H, image_W
        self.retinal_H, self.retinal_W = retinal_H, retinal_W
        self.log_r = log_r
        self.channel = channel
        self.r = float(r)
        self.w_scale = float(w_scale)
        self.w_rotation = float(w_rotation)
        # TODO(synk): the exact "scale2_large11" scale/rotation-prediction
        # sub-network is not in the provided source; approximated here by a
        # deterministic (global-avg-pool -> linear -> sigmoid) head.
        key = jax.random.PRNGKey(0) if key is None else key
        k1, k2 = jax.random.split(key)
        self.Wp = jax.random.normal(k1, (channel, 2), dtype=jnp.float32) * 0.1
        self.bp = jax.random.normal(k2, (2,), dtype=jnp.float32) * 0.1

    def __call__(self, x, l_t, w=1.0, test=False):
        # x: (B, C, H, W) float32 (NCHW, matching PyTorch); l_t: (B, 2) in [-1,1]
        # TODO(synk): `test` flag behavior of the original module is unknown; ignored.
        B, C, H, W = x.shape
        rH, rW = self.retinal_H, self.retinal_W
        x = x.astype(jnp.float32)

        # --- scale / rotation weights (tiny head, plain JAX glue) ---
        pooled = jnp.mean(x, axis=(2, 3))                        # (B, C)
        logits = pooled @ self.Wp + self.bp                      # (B, 2)
        gates = jax.nn.sigmoid(logits)
        weight_s = gates[:, 0] * self.w_scale * w                # (B,)
        weight_r = gates[:, 1] * self.w_rotation                 # (B,)

        # --- retina: log-polar sampling, coordinates only go to the kernel ---
        sx, sy = _log_polar_grid(l_t, weight_s, weight_r, self.r_min,
                                 self.r_max, rH, rW, self.r, self.log_r)
        px = (sx + 1.0) * 0.5 * (W - 1)          # align_corners=True convention
        py = (sy + 1.0) * 0.5 * (H - 1)
        g_flat = separable_sample_coords(x, py, px,
                                         wrap_y=False, wrap_x=False)
        g_t = g_flat.reshape(B, C, rH, rW)

        # --- inverse retina: fixed inverse log-polar mapping ---
        u, v = _inverse_coords(l_t, self.r_min, self.r_max, rH, rW,
                               self.image_H, self.image_W, self.log_r)
        # radial axis (rH): zeros padding; angular axis (rW): wrap-around.
        i_flat = separable_sample_coords(g_t, u, v,
                                         wrap_y=False, wrap_x=True)
        i_t = i_flat.reshape(B, C, self.image_H, self.image_W)

        return g_t, i_t, weight_s, weight_r


if __name__ == "__main__":
    key = jax.random.PRNGKey(0)
    kx, kl, kc1, kc2, ki, kp = jax.random.split(key, 6)

    B, C, H, W = 2, 3, 16, 16
    rH, rW = 8, 8

    x = jax.random.normal(kx, (B, C, H, W), dtype=jnp.float32)
    l_t = jax.random.uniform(kl, (B, 2), minval=-0.3, maxval=0.3,
                             dtype=jnp.float32)

    # Sanity: Pallas separable sampler (in-kernel factor construction) vs the
    # pure-JAX reference, exercising both wrap modes and multi-tile grids.
    # (loose tolerance: matmul operands are cast to bf16 inside the kernel).
    Mtest = 384
    timg = jax.random.normal(ki, (B, C, H, W), dtype=jnp.float32)
    tpx = jax.random.uniform(kc1, (B, Mtest), minval=-2.0, maxval=W + 1.0,
                             dtype=jnp.float32)
    tpy = jax.random.uniform(kc2, (B, Mtest), minval=-2.0, maxval=H + 1.0,
                             dtype=jnp.float32)
    for wrap_x in (False, True):
        for tmax in (2048, 128):   # tmax=128 forces a multi-tile m grid
            got = separable_sample_coords(timg, tpy, tpx, wrap_y=False,
                                          wrap_x=wrap_x, tile_m_max=tmax)
            want = _separable_sample_ref(timg, tpy, tpx, wrap_y=False,
                                         wrap_x=wrap_x)
            err = float(jnp.max(jnp.abs(got - want)))
            scale = float(jnp.max(jnp.abs(want))) + 1.0
            assert err < 0.05 * scale, (wrap_x, tmax, err, scale)

    model = RetinalScale2Large11(
        r_min=0.05, r_max=0.8, image_H=H, image_W=W,
        retinal_H=rH, retinal_W=rW, log_r=True, channel=C,
        r=0.5, w_scale=1.0, w_rotation=2.0 * np.pi, key=kp)

    g_t, i_t, weight_s, weight_r = model(x, l_t, w=1.0, test=False)
    jax.block_until_ready((g_t, i_t, weight_s, weight_r))

    assert g_t.shape == (B, C, rH, rW)
    assert i_t.shape == (B, C, H, W)
    assert weight_s.shape == (B,)
    assert weight_r.shape == (B,)
    assert bool(jnp.all(jnp.isfinite(g_t))) and bool(jnp.all(jnp.isfinite(i_t)))
    print("KERNEL_OK")
</pallas_src>

<mosaic_0001>
module attributes {stable_mosaic.version = 11 : i64} {
  func.func @_separable_sample_kernel(%arg0: i32, %arg1: i32, %arg2: memref<1x48x16xbf16, #tpu.memory_space<vmem>>, %arg3: memref<1x1x384xf32, #tpu.memory_space<vmem>>, %arg4: memref<1x1x384xf32, #tpu.memory_space<vmem>>, %arg5: memref<1x3x384xf32, #tpu.memory_space<vmem>>) attributes {dimension_semantics = [#tpu.dimension_semantics<parallel>, #tpu.dimension_semantics<parallel>], iteration_bounds = array<i64: 2, 1>, scalar_prefetch = 0 : i64, scratch_operands = 0 : i64, tpu.core_type = #tpu.core_type<tc>, window_params = [{transform_indices = @transform_0, window_bounds = array<i64: 1, 48, 16>}, {transform_indices = @transform_1, window_bounds = array<i64: 1, 1, 384>}, {transform_indices = @transform_2, window_bounds = array<i64: 1, 1, 384>}, {transform_indices = @transform_3, window_bounds = array<i64: 1, 3, 384>}]} {
    %c0 = arith.constant 0 : index
    %c0_0 = arith.constant 0 : index
    %c0_1 = arith.constant 0 : index
    %0 = vector.load %arg4[%c0, %c0_0, %c0_1] : memref<1x1x384xf32, #tpu.memory_space<vmem>>, vector<1x1x384xf32>
    %1 = vector.shape_cast %0 : vector<1x1x384xf32> to vector<1x384xf32>
    %c0_2 = arith.constant 0 : index
    %c0_3 = arith.constant 0 : index
    %c0_4 = arith.constant 0 : index
    %2 = vector.load %arg3[%c0_2, %c0_3, %c0_4] : memref<1x1x384xf32, #tpu.memory_space<vmem>>, vector<1x1x384xf32>
    %3 = vector.shape_cast %2 : vector<1x1x384xf32> to vector<1x384xf32>
    %4 = math.floor %1 : vector<1x384xf32>
    %cst = arith.constant 1.000000e+00 : f32
    %5 = vector.broadcast %cst : f32 to vector<1x384xf32>
    %6 = arith.addf %4, %5 : vector<1x384xf32>
    %7 = arith.subf %1, %4 : vector<1x384xf32>
    %cst_5 = arith.constant 1.000000e+00 : f32
    %8 = vector.broadcast %cst_5 : f32 to vector<1x384xf32>
    %9 = arith.subf %8, %7 : vector<1x384xf32>
    %10 = tpu.iota {dimensions = array<i32: 0>} : vector<16x384xi32>
    %cst_6 = arith.constant 0.000000e+00 : f32
    %11 = vector.broadcast %cst_6 : f32 to vector<1x384xf32>
    %12 = arith.cmpf oge, %4, %11 : vector<1x384xf32>
    %cst_7 = arith.constant 1.500000e+01 : f32
    %13 = vector.broadcast %cst_7 : f32 to vector<1x384xf32>
    %14 = arith.cmpf ole, %4, %13 : vector<1x384xf32>
    %15 = arith.andi %12, %14 : vector<1x384xi1>
    %cst_8 = arith.constant 0.000000e+00 : f32
    %cst_9 = arith.constant 1.500000e+01 : f32
    %16 = vector.broadcast %cst_8 : f32 to vector<1x384xf32>
    %17 = arith.maximumf %16, %4 : vector<1x384xf32>
    %18 = vector.broadcast %cst_9 : f32 to vector<1x384xf32>
    %19 = arith.minimumf %18, %17 : vector<1x384xf32>
    %20 = arith.fptosi %19 : vector<1x384xf32> to vector<1x384xi32>
    %cst_10 = arith.constant 0.000000e+00 : f32
    %21 = vector.broadcast %cst_10 : f32 to vector<1x384xf32>
    %22 = arith.select %15, %9, %21 : vector<1x384xi1>, vector<1x384xf32>
    %23 = vector.broadcast %20 : vector<1x384xi32> to vector<16x384xi32>
    %24 = arith.cmpi eq, %10, %23 : vector<16x384xi32>
    %25 = arith.extui %24 : vector<16x384xi1> to vector<16x384xi32>
    %26 = arith.sitofp %25 : vector<16x384xi32> to vector<16x384xf32>
    %27 = vector.broadcast %22 : vector<1x384xf32> to vector<16x384xf32>
    %28 = arith.mulf %26, %27 : vector<16x384xf32>
    %cst_11 = arith.constant 0.000000e+00 : f32
    %29 = vector.broadcast %cst_11 : f32 to vector<1x384xf32>
    %30 = arith.cmpf oge, %6, %29 : vector<1x384xf32>
    %cst_12 = arith.constant 1.500000e+01 : f32
    %31 = vector.broadcast %cst_12 : f32 to vector<1x384xf32>
    %32 = arith.cmpf ole, %6, %31 : vector<1x384xf32>
    %33 = arith.andi %30, %32 : vector<1x384xi1>
    %cst_13 = arith.constant 0.000000e+00 : f32
    %cst_14 = arith.constant 1.500000e+01 : f32
    %34 = vector.broadcast %cst_13 : f32 to vector<1x384xf32>
    %35 = arith.maximumf %34, %6 : vector<1x384xf32>
    %36 = vector.broadcast %cst_14 : f32 to vector<1x384xf32>
    %37 = arith.minimumf %36, %35 : vector<1x384xf32>
    %38 = arith.fptosi %37 : vector<1x384xf32> to vector<1x384xi32>
    %cst_15 = arith.constant 0.000000e+00 : f32
    %39 = vector.broadcast %cst_15 : f32 to vector<1x384xf32>
    %40 = arith.select %33, %7, %39 : vector<1x384xi1>, vector<1x384xf32>
    %41 = vector.broadcast %38 : vector<1x384xi32> to vector<16x384xi32>
    %42 = arith.cmpi eq, %10, %41 : vector<16x384xi32>
    %43 = arith.extui %42 : vector<16x384xi1> to vector<16x384xi32>
    %44 = arith.sitofp %43 : vector<16x384xi32> to vector<16x384xf32>
    %45 = vector.broadcast %40 : vector<1x384xf32> to vector<16x384xf32>
    %46 = arith.mulf %44, %45 : vector<16x384xf32>
    %47 = arith.addf %28, %46 : vector<16x384xf32>
    %48 = arith.truncf %47 : vector<16x384xf32> to vector<16x384xbf16>
    %49 = math.floor %3 : vector<1x384xf32>
    %cst_16 = arith.constant 1.000000e+00 : f32
    %50 = vector.broadcast %cst_16 : f32 to vector<1x384xf32>
    %51 = arith.addf %49, %50 : vector<1x384xf32>
    %52 = arith.subf %3, %49 : vector<1x384xf32>
    %cst_17 = arith.constant 1.000000e+00 : f32
    %53 = vector.broadcast %cst_17 : f32 to vector<1x384xf32>
    %54 = arith.subf %53, %52 : vector<1x384xf32>
    %55 = tpu.iota {dimensions = array<i32: 0>} : vector<16x384xi32>
    %cst_18 = arith.constant 0.000000e+00 : f32
    %56 = vector.broadcast %cst_18 : f32 to vector<1x384xf32>
    %57 = arith.cmpf oge, %49, %56 : vector<1x384xf32>
    %cst_19 = arith.constant 1.500000e+01 : f32
    %58 = vector.broadcast %cst_19 : f32 to vector<1x384xf32>
    %59 = arith.cmpf ole, %49, %58 : vector<1x384xf32>
    %60 = arith.andi %57, %59 : vector<1x384xi1>
    %cst_20 = arith.constant 0.000000e+00 : f32
    %cst_21 = arith.constant 1.500000e+01 : f32
    %61 = vector.broadcast %cst_20 : f32 to vector<1x384xf32>
    %62 = arith.maximumf %61, %49 : vector<1x384xf32>
    %63 = vector.broadcast %cst_21 : f32 to vector<1x384xf32>
    %64 = arith.minimumf %63, %62 : vector<1x384xf32>
    %65 = arith.fptosi %64 : vector<1x384xf32> to vector<1x384xi32>
    %cst_22 = arith.constant 0.000000e+00 : f32
    %66 = vector.broadcast %cst_22 : f32 to vector<1x384xf32>
    %67 = arith.select %60, %54, %66 : vector<1x384xi1>, vector<1x384xf32>
    %68 = vector.broadcast %65 : vector<1x384xi32> to vector<16x384xi32>
    %69 = arith.cmpi eq, %55, %68 : vector<16x384xi32>
    %70 = arith.extui %69 : vector<16x384xi1> to vector<16x384xi32>
    %71 = arith.sitofp %70 : vector<16x384xi32> to vector<16x384xf32>
    %72 = vector.broadcast %67 : vector<1x384xf32> to vector<16x384xf32>
    %73 = arith.mulf %71, %72 : vector<16x384xf32>
    %cst_23 = arith.constant 0.000000e+00 : f32
    %74 = vector.broadcast %cst_23 : f32 to vector<1x384xf32>
    %75 = arith.cmpf oge, %51, %74 : vector<1x384xf32>
    %cst_24 = arith.constant 1.500000e+01 : f32
    %76 = vector.broadcast %cst_24 : f32 to vector<1x384xf32>
    %77 = arith.cmpf ole, %51, %76 : vector<1x384xf32>
    %78 = arith.andi %75, %77 : vector<1x384xi1>
    %cst_25 = arith.constant 0.000000e+00 : f32
    %cst_26 = arith.constant 1.500000e+01 : f32
    %79 = vector.broadcast %cst_25 : f32 to vector<1x384xf32>
    %80 = arith.maximumf %79, %51 : vector<1x384xf32>
    %81 = vector.broadcast %cst_26 : f32 to vector<1x384xf32>
    %82 = arith.minimumf %81, %80 : vector<1x384xf32>
    %83 = arith.fptosi %82 : vector<1x384xf32> to vector<1x384xi32>
    %cst_27 = arith.constant 0.000000e+00 : f32
    %84 = vector.broadcast %cst_27 : f32 to vector<1x384xf32>
    %85 = arith.select %78, %52, %84 : vector<1x384xi1>, vector<1x384xf32>
    %86 = vector.broadcast %83 : vector<1x384xi32> to vector<16x384xi32>
    %87 = arith.cmpi eq, %55, %86 : vector<16x384xi32>
    %88 = arith.extui %87 : vector<16x384xi1> to vector<16x384xi32>
    %89 = arith.sitofp %88 : vector<16x384xi32> to vector<16x384xf32>
    %90 = vector.broadcast %85 : vector<1x384xf32> to vector<16x384xf32>
    %91 = arith.mulf %89, %90 : vector<16x384xf32>
    %92 = arith.addf %73, %91 : vector<16x384xf32>
    %c0_28 = arith.constant 0 : index
    %c0_29 = arith.constant 0 : index
    %c0_30 = arith.constant 0 : index
    %93 = vector.load %arg2[%c0_28, %c0_29, %c0_30] : memref<1x48x16xbf16, #tpu.memory_space<vmem>>, vector<1x48x16xbf16>
    %94 = vector.shape_cast %93 : vector<1x48x16xbf16> to vector<48x16xbf16>
    %cst_31 = arith.constant dense<0.000000e+00> : vector<48x384xf32>
    %95 = tpu.matmul %94, %48, %cst_31 {dimension_numbers = #tpu.dot_dimension_numbers<[1], [0], [0], [1], [0, 0, 1, 1], [], []>} : vector<48x16xbf16>, vector<16x384xbf16>, vector<48x384xf32> -> vector<48x384xf32>
    %96 = vector.shape_cast %95 : vector<48x384xf32> to vector<3x16x384xf32>
    %97 = vector.shape_cast %92 : vector<16x384xf32> to vector<1x16x384xf32>
    %98 = vector.broadcast %97 : vector<1x16x384xf32> to vector<3x16x384xf32>
    %99 = arith.mulf %96, %98 : vector<3x16x384xf32>
    %cst_32 = arith.constant dense<0.000000e+00> : vector<3x384xf32>
    %100 = vector.multi_reduction <add>, %99, %cst_32 [1] : vector<3x16x384xf32> to vector<3x384xf32>
    %c0_33 = arith.constant 0 : index
    %c0_34 = arith.constant 0 : index
    %c0_35 = arith.constant 0 : index
    %101 = vector.load %arg5[%c0_33, %c0_34, %c0_35] : memref<1x3x384xf32, #tpu.memory_space<vmem>>, vector<1x3x384xf32>
    %102 = vector.shape_cast %101 : vector<1x3x384xf32> to vector<3x384xf32>
    %103 = vector.shape_cast %100 : vector<3x384xf32> to vector<1x3x384xf32>
    tpu.vector_store %arg5[%c0_33, %c0_34, %c0_35], %103 {strides = array<i32>} : memref<1x3x384xf32, #tpu.memory_space<vmem>>, vector<1x3x384xf32>,
    return
  }
  func.func @transform_0(%arg0: i32, %arg1: i32) -> (i32, i32, i32) {
    %c0_i32 = arith.constant 0 : i32
    %c0_i32_0 = arith.constant 0 : i32
    %c0_i32_1 = arith.constant 0 : i32
    return %arg0, %c0_i32, %c0_i32_0 : i32, i32, i32
  }
  func.func @transform_1(%arg0: i32, %arg1: i32) -> (i32, i32, i32) {
    %c0_i32 = arith.constant 0 : i32
    %c0_i32_0 = arith.constant 0 : i32
    return %arg0, %c0_i32, %arg1 : i32, i32, i32
  }
  func.func @transform_2(%arg0: i32, %arg1: i32) -> (i32, i32, i32) {
    %c0_i32 = arith.constant 0 : i32
    %c0_i32_0 = arith.constant 0 : i32
    return %arg0, %c0_i32, %arg1 : i32, i32, i32
  }
  func.func @transform_3(%arg0: i32, %arg1: i32) -> (i32, i32, i32) {
    %c0_i32 = arith.constant 0 : i32
    %c0_i32_0 = arith.constant 0 : i32
    return %arg0, %c0_i32, %arg1 : i32, i32, i32
  }
}

</mosaic_0001>

<llo_original>
// kernel: tpu_custom_call.1
$region0: #{tpu_custom_call.1}
  #allocation0 [shape = 'u32[]', space=smem, size = 0x4, offset = 0x4, fixed_abs, tag = 'smem constant byte address 0x4 - core index']
  #allocation1 [shape = 'u32[72,128]{1,0:T(1,128)}', space=vmem, size = 0x9000, scoped, tag = 'internal scratch']
  %s0 = inlined_call_operand.vmem [shape: bf16[2,48,16], index: 0, kind: input, shape index: {}]
  %s1 = inlined_call_operand.vmem [shape: f32[2,1,384], index: 1, kind: input, shape index: {}]
  %s2 = inlined_call_operand.vmem [shape: f32[2,1,384], index: 2, kind: input, shape index: {}]
  %s3 = inlined_call_operand.vmem [shape: f32[2,3,384], index: 3, kind: output, shape index: {}]
  %s4 = sld [smem:[#allocation0]]
  $region45: #{tpu_custom_call.1} parent=0
    _
  %s6 = ssub.s32 1, %s4
  %s7 = scalar_select 0, %s6, %s4
  loop: start=0, step=1, limit=4
  $region2: #{tpu_custom_call.1} parent=0 // loop_pre_header
    _
  $region3: #{tpu_custom_call.1} parent=0 // loop_header
    %s9 = sphi 0, %s13
    %p10 = scmp.ge.s32.totalorder %s9, 4
    %s16 = sphi 0, %s28
    %s17 = sphi 0, %s24
    %s18 = sphi 0, %s16
    %s19 = sphi 0, %s17
    %s20 = sphi 0, %s18
    %s21 = sphi 0, %s19
    %s31 = sphi 0, %s33
    %s34 = sphi 0, %s31
    %s35 = sphi 0, %s34
    %s51 = sphi 0, %s35
    %s59 = sphi 0, %s61
    %s62 = sphi 0, %s59
    %s63 = sphi 0, %s62
    %s79 = sphi 0, %s63
    %s87 = sphi 0, %s89
    %s90 = sphi 0, %s87
    %s91 = sphi 0, %s90
    %s107 = sphi 0, %s91
    %s115 = sphi 0, %s117
    %s118 = sphi 0, %s115
    %s119 = sphi 0, %s118
    %s135 = sphi 0, %s119
  $region4: #{tpu_custom_call.1} parent=0 // loop_header_branch
    %12 = sbr.rel (%p10) target = $region8
  $region5: #{tpu_custom_call.1} parent=0 // loop_body
    %s14 = ssub.s32 %s9, 1
    %s15 = ssub.s32 %s9, 2
    %s22 = sadd.s32 1, %s17
    %p23 = scmp.ge.s32.totalorder %s22, 1
    %s24 = scalar_select %p23, 0, %s22
    %s25 = sadd.s32 1, %s16
    %s26 = scalar_select %p23, %s25, %s16
    %p27 = scmp.ge.s32.totalorder %s26, 2
    %s28 = scalar_select %p27, 0, %s26
    %s29 = ssub.s32 %s16, %s28
    %p30 = scmp.eq.s32.totalorder %s29, 0
    %s32 = sadd.s32 %s31, 1
    %s33 = scalar_select %p30, %s31, %s32
    %p36 = pneg %p30
    %p37 = scmp.eq.s32.totalorder %s9, 1
    %p38 = por %p36, %p37
    %p39 = scmp.ne.s32.totalorder %s31, %s34
    %p40 = scmp.eq.s32.totalorder %s9, 0
    %p41 = por %p39, %p40
    %p42 = scmp.ne.s32.totalorder %s31, %s34
    %p43 = scmp.eq.s32.totalorder %s14, 1
    %p44 = por %p42, %p43
    %p45 = scmp.ne.s32.totalorder %s34, %s35
    %p46 = scmp.eq.s32.totalorder %s14, 0
    %p47 = por %p45, %p46
    %p48 = scmp.ne.s32.totalorder %s34, %s35
    %p49 = scmp.eq.s32.totalorder %s15, 1
    %p50 = por %p48, %p49
    %p52 = scmp.ne.s32.totalorder %s35, %s51
    %p53 = scmp.eq.s32.totalorder %s15, 0
    %p54 = por %p52, %p53
    %s55 = ssub.s32 %s16, %s28
    %s56 = ssub.s32 %s17, %s24
    %s57 = sor.u32 %s55, %s56
    %p58 = scmp.eq.s32.totalorder %s57, 0
    %s60 = sadd.s32 %s59, 1
    %s61 = scalar_select %p58, %s59, %s60
    %p64 = pneg %p58
    %p65 = scmp.eq.s32.totalorder %s9, 1
    %p66 = por %p64, %p65
    %p67 = scmp.ne.s32.totalorder %s59, %s62
    %p68 = scmp.eq.s32.totalorder %s9, 0
    %p69 = por %p67, %p68
    %p70 = scmp.ne.s32.totalorder %s59, %s62
    %p71 = scmp.eq.s32.totalorder %s14, 1
    %p72 = por %p70, %p71
    %p73 = scmp.ne.s32.totalorder %s62, %s63
    %p74 = scmp.eq.s32.totalorder %s14, 0
    %p75 = por %p73, %p74
    %p76 = scmp.ne.s32.totalorder %s62, %s63
    %p77 = scmp.eq.s32.totalorder %s15, 1
    %p78 = por %p76, %p77
    %p80 = scmp.ne.s32.totalorder %s63, %s79
    %p81 = scmp.eq.s32.totalorder %s15, 0
    %p82 = por %p80, %p81
    %s83 = ssub.s32 %s16, %s28
    %s84 = ssub.s32 %s17, %s24
    %s85 = sor.u32 %s83, %s84
    %p86 = scmp.eq.s32.totalorder %s85, 0
    %s88 = sadd.s32 %s87, 1
    %s89 = scalar_select %p86, %s87, %s88
    %p92 = pneg %p86
    %p93 = scmp.eq.s32.totalorder %s9, 1
    %p94 = por %p92, %p93
    %p95 = scmp.ne.s32.totalorder %s87, %s90
    %p96 = scmp.eq.s32.totalorder %s9, 0
    %p97 = por %p95, %p96
    %p98 = scmp.ne.s32.totalorder %s87, %s90
    %p99 = scmp.eq.s32.totalorder %s14, 1
    %p100 = por %p98, %p99
    %p101 = scmp.ne.s32.totalorder %s90, %s91
    %p102 = scmp.eq.s32.totalorder %s14, 0
    %p103 = por %p101, %p102
    %p104 = scmp.ne.s32.totalorder %s90, %s91
    %p105 = scmp.eq.s32.totalorder %s15, 1
    %p106 = por %p104, %p105
    %p108 = scmp.ne.s32.totalorder %s91, %s107
    %p109 = scmp.eq.s32.totalorder %s15, 0
    %p110 = por %p108, %p109
    %s111 = ssub.s32 %s16, %s28
    %s112 = ssub.s32 %s17, %s24
    %s113 = sor.u32 %s111, %s112
    %p114 = scmp.eq.s32.totalorder %s113, 0
    %s116 = sadd.s32 %s115, 1
    %s117 = scalar_select %p114, %s115, %s116
    %p120 = pneg %p114
    %p121 = scmp.eq.s32.totalorder %s9, 1
    %p122 = por %p120, %p121
    %p123 = scmp.ne.s32.totalorder %s115, %s118
    %p124 = scmp.eq.s32.totalorder %s9, 0
    %p125 = por %p123, %p124
    %p126 = scmp.ne.s32.totalorder %s115, %s118
    %p127 = scmp.eq.s32.totalorder %s14, 1
    %p128 = por %p126, %p127
    %p129 = scmp.ne.s32.totalorder %s118, %s119
    %p130 = scmp.eq.s32.totalorder %s14, 0
    %p131 = por %p129, %p130
    %p132 = scmp.ne.s32.totalorder %s118, %s119
    %p133 = scmp.eq.s32.totalorder %s15, 1
    %p134 = por %p132, %p133
    %p136 = scmp.ne.s32.totalorder %s119, %s135
    %p137 = scmp.eq.s32.totalorder %s15, 0
    %p138 = por %p136, %p137
    %p139 = scmp.le.s32.totalorder 1, %s9
    %p140 = scmp.lt.s32.totalorder %s9, 3
    %p141 = pnand %p139, %p140
    %p142 = pneg %p141
    // Predicated region
    $region9: #{tpu_custom_call.1} parent=5 // pred_check
      _
    $region10: #{tpu_custom_call.1} parent=5 // pred_check_branch
      %144 = sbr.rel (%p141) target = $region12
    $region11: #{tpu_custom_call.1} parent=5 // pred_region
      %s145 = ssub.s32 %s9, 1
    $region12: #{tpu_custom_call.1} parent=5 // pred_fallthru
      _
    %p146 = scmp.lt.s32.totalorder %s9, 2
    // Predicated region
    $region13: #{tpu_custom_call.1} parent=5 // pred_check
      %p147 = pneg %p146
    $region14: #{tpu_custom_call.1} parent=5 // pred_check_branch
      %149 = sbr.rel (%p147) target = $region16
    $region15: #{tpu_custom_call.1} parent=5 // pred_region
      // Predicated region
      $region17: #{tpu_custom_call.1} parent=15 // pred_check
        %p150 = pneg %p41
      $region18: #{tpu_custom_call.1} parent=15 // pred_check_branch
        %152 = sbr.rel (%p150) target = $region20
      $region19: #{tpu_custom_call.1} parent=15 // pred_region
        %p153 = scmp.lt.s32.totalorder %s16, 1
        %s154 = scalar_select %p153, %s16, 1
        %s155 = smul.addr %s154, 6
        %s156 = smul.addr %s155, 4
        %s157 = scalar_lea.vmem %s0, %s156
      $region20: #{tpu_custom_call.1} parent=15 // pred_fallthru
        _
      // Predicated region
      $region21: #{tpu_custom_call.1} parent=15 // pred_check
        %p158 = pneg %p69
      $region22: #{tpu_custom_call.1} parent=15 // pred_check_branch
        %160 = sbr.rel (%p158) target = $region24
      $region23: #{tpu_custom_call.1} parent=15 // pred_region
        %s161 = smul.u32 3, %s17
        %p162 = scmp.lt.s32.totalorder %s16, 1
        %s163 = scalar_select %p162, %s16, 1
        %p164 = scmp.lt.s32.totalorder %s161, 2
        %s165 = scalar_select %p164, %s161, 2
        %s166 = smul.addr %s163, 3
        %s167 = sadd.s32 %s165, %s166
        %s168 = scalar_lea.vmem %s1, %s167
        %s169 = smul.u32 3, %s17
      $region24: #{tpu_custom_call.1} parent=15 // pred_fallthru
        _
      // Predicated region
      $region25: #{tpu_custom_call.1} parent=15 // pred_check
        %p170 = pneg %p97
      $region26: #{tpu_custom_call.1} parent=15 // pred_check_branch
        %172 = sbr.rel (%p170) target = $region28
      $region27: #{tpu_custom_call.1} parent=15 // pred_region
        %s173 = smul.u32 3, %s17
        %p174 = scmp.lt.s32.totalorder %s16, 1
        %s175 = scalar_select %p174, %s16, 1
        %p176 = scmp.lt.s32.totalorder %s173, 2
        %s177 = scalar_select %p176, %s173, 2
        %s178 = smul.addr %s175, 3
        %s179 = sadd.s32 %s177, %s178
        %s180 = scalar_lea.vmem %s2, %s179
        %s181 = smul.u32 3, %s17
      $region28: #{tpu_custom_call.1} parent=15 // pred_fallthru
        _
    $region16: #{tpu_custom_call.1} parent=5 // pred_fallthru
      _
    %p182 = scmp.le.s32.totalorder 1, %s9
    %p183 = scmp.lt.s32.totalorder %s9, 3
    %p184 = pnand %p182, %p183
    %p185 = pneg %p184
    // Predicated region
    $region29: #{tpu_custom_call.1} parent=5 // pred_check
      _
    $region30: #{tpu_custom_call.1} parent=5 // pred_check_branch
      %187 = sbr.rel (%p184) target = $region32
    $region31: #{tpu_custom_call.1} parent=5 // pred_region
      %s188 = ssub.s32 %s9, 1
      %p189 = scmp.lt.s32.totalorder %s18, 1
      %s190 = scalar_select %p189, %s18, 1
      %s191 = smul.addr %s190, 6
      %s192 = smul.addr %s191, 4
      %s193 = scalar_lea.vmem %s0, %s192
      %p194 = pneg %p47
      %p195 = pneg %p44
      %s196 = smul.u32 3, %s19
      %p197 = scmp.lt.s32.totalorder %s18, 1
      %s198 = scalar_select %p197, %s18, 1
      %p199 = scmp.lt.s32.totalorder %s196, 2
      %s200 = scalar_select %p199, %s196, 2
      %s201 = smul.addr %s198, 3
      %s202 = sadd.s32 %s200, %s201
      %s203 = scalar_lea.vmem %s1, %s202
      %p204 = pneg %p75
      %p205 = pneg %p72
      %s206 = smul.u32 3, %s19
      %p207 = scmp.lt.s32.totalorder %s18, 1
      %s208 = scalar_select %p207, %s18, 1
      %p209 = scmp.lt.s32.totalorder %s206, 2
      %s210 = scalar_select %p209, %s206, 2
      %s211 = smul.addr %s208, 3
      %s212 = sadd.s32 %s210, %s211
      %s213 = scalar_lea.vmem %s2, %s212
      %p214 = pneg %p103
      %p215 = pneg %p100
      %p216 = pneg %p131
      %p217 = pneg %p128
      %s218 = smul.u32 3, %s19
      %p219 = scmp.lt.s32.totalorder %s18, 1
      %s220 = scalar_select %p219, %s18, 1
      %p221 = scmp.lt.s32.totalorder %s218, 2
      %s222 = scalar_select %p221, %s218, 2
      %s223 = smul.addr %s220, 3
      %s224 = sadd.s32 %s222, %s223
      %s225 = smul.addr %s224, 4
      %s226 = scalar_lea.vmem %s3, %s225
      %p227 = scmp.lt.s32.totalorder %s18, 1
      %s228 = scalar_select %p227, %s18, 1
      %s229 = smul.addr %s228, 6
      %s230 = smul.addr %s229, 4
      %s231 = scalar_lea.vmem %s0, %s230
      %s232 = smul.u32 3, %s19
      %p233 = scmp.lt.s32.totalorder %s18, 1
      %s234 = scalar_select %p233, %s18, 1
      %p235 = scmp.lt.s32.totalorder %s232, 2
      %s236 = scalar_select %p235, %s232, 2
      %s237 = smul.addr %s234, 3
      %s238 = sadd.s32 %s236, %s237
      %s239 = scalar_lea.vmem %s1, %s238
      %s240 = smul.u32 3, %s19
      %s241 = smul.u32 3, %s19
      %p242 = scmp.lt.s32.totalorder %s18, 1
      %s243 = scalar_select %p242, %s18, 1
      %p244 = scmp.lt.s32.totalorder %s241, 2
      %s245 = scalar_select %p244, %s241, 2
      %s246 = smul.addr %s243, 3
      %s247 = sadd.s32 %s245, %s246
      %s248 = scalar_lea.vmem %s2, %s247
      %s249 = smul.u32 3, %s19
      %s250 = smul.u32 3, %s19
      %p251 = scmp.lt.s32.totalorder %s18, 1
      %s252 = scalar_select %p251, %s18, 1
      %p253 = scmp.lt.s32.totalorder %s250, 2
      %s254 = scalar_select %p253, %s250, 2
      %s255 = smul.addr %s252, 3
      %s256 = sadd.s32 %s254, %s255
      %s257 = smul.addr %s256, 4
      %s258 = scalar_lea.vmem %s3, %s257
      %s259 = smul.u32 3, %s19
      %v261 = vld [vmem:[%s248] sm:$0x7]
      %v262 = vld [vmem:[%s239] sm:$0x7]
      %v263 = vfloor.f32 %v261
      %v264 = vadd.f32 %v263, 1.0
      %v265 = vsub.f32 %v261, %v263
      %v266 = vsub.f32 1.0, %v265
      %v267 = vlaneseq
      %v268 = vshrl.u32 %v267, 7
      %v269 = vadd.s32 %v268, 8
      %vm270 = vcmp.ge.f32.partialorder %v263, 0.0
      %vm271 = vcmp.le.f32.partialorder %v263, 15.0
      %vm272 = vmand %vm270, %vm271
      %v273 = vmax.f32 %v263, 0.0
      %v274 = vmin.f32 %v273, 15.0
      %v275 = vcvt.f32.s32.to.zero.pseudo %v274
      %v276 = vsel %vm272, %v266, 0.0
      %v277 = vperm.slane %v275, 0
      %v278 = vperm.slane %v275, 1
      %v279 = vperm.slane %v275, 2
      %vm280 = vcmp.eq.s32.totalorder %v268, %v277
      %vm281 = vcmp.eq.s32.totalorder %v268, %v278
      %vm282 = vcmp.eq.s32.totalorder %v268, %v279
      %vm283 = vcmp.eq.s32.totalorder %v269, %v277
      %vm284 = vcmp.eq.s32.totalorder %v269, %v278
      %vm285 = vcmp.eq.s32.totalorder %v269, %v279
      %v286 = vsel %vm280, 1, 0
      %v287 = vsel %vm281, 1, 0
      %v288 = vsel %vm282, 1, 0
      %v289 = vsel %vm283, 1, 0
      %v290 = vsel %vm284, 1, 0
      %v291 = vsel %vm285, 1, 0
      %v292 = vcvt.s32.f32 %v286
      %v293 = vcvt.s32.f32 %v287
      %v294 = vcvt.s32.f32 %v288
      %v295 = vcvt.s32.f32 %v289
      %v296 = vcvt.s32.f32 %v290
      %v297 = vcvt.s32.f32 %v291
      %v299 = vperm.slane %v276, 0
      %v300 = vperm.slane %v276, 1
      %v301 = vperm.slane %v276, 2
      %v305 = vmul.f32 %v292, %v299
      %v306 = vmul.f32 %v293, %v300
      %v307 = vmul.f32 %v294, %v301
      %v308 = vmul.f32 %v295, %v299
      %v309 = vmul.f32 %v296, %v300
      %v310 = vmul.f32 %v297, %v301
      %vm311 = vcmp.ge.f32.partialorder %v264, 0.0
      %vm312 = vcmp.le.f32.partialorder %v264, 15.0
      %vm313 = vmand %vm311, %vm312
      %v314 = vmax.f32 %v264, 0.0
      %v315 = vmin.f32 %v314, 15.0
      %v316 = vcvt.f32.s32.to.zero.pseudo %v315
      %v317 = vsel %vm313, %v265, 0.0
      %v318 = vperm.slane %v316, 0
      %v319 = vperm.slane %v316, 1
      %v320 = vperm.slane %v316, 2
      %vm321 = vcmp.eq.s32.totalorder %v268, %v318
      %vm322 = vcmp.eq.s32.totalorder %v268, %v319
      %vm323 = vcmp.eq.s32.totalorder %v268, %v320
      %vm324 = vcmp.eq.s32.totalorder %v269, %v318
      %vm325 = vcmp.eq.s32.totalorder %v269, %v319
      %vm326 = vcmp.eq.s32.totalorder %v269, %v320
      %v327 = vsel %vm321, 1, 0
      %v328 = vsel %vm322, 1, 0
      %v329 = vsel %vm323, 1, 0
      %v330 = vsel %vm324, 1, 0
      %v331 = vsel %vm325, 1, 0
      %v332 = vsel %vm326, 1, 0
      %v333 = vcvt.s32.f32 %v327
      %v334 = vcvt.s32.f32 %v328
      %v335 = vcvt.s32.f32 %v329
      %v336 = vcvt.s32.f32 %v330
      %v337 = vcvt.s32.f32 %v331
      %v338 = vcvt.s32.f32 %v332
      %v340 = vperm.slane %v317, 0
      %v341 = vperm.slane %v317, 1
      %v342 = vperm.slane %v317, 2
      %v346 = vmul.f32 %v333, %v340
      %v347 = vmul.f32 %v334, %v341
      %v348 = vmul.f32 %v335, %v342
      %v349 = vmul.f32 %v336, %v340
      %v350 = vmul.f32 %v337, %v341
      %v351 = vmul.f32 %v338, %v342
      %v352 = vadd.f32 %v305, %v346
      %v353 = vadd.f32 %v306, %v347
      %v354 = vadd.f32 %v307, %v348
      %v355 = vadd.f32 %v308, %v349
      %v356 = vadd.f32 %v309, %v350
      %v357 = vadd.f32 %v310, %v351
      %v358 = vpack.c.bf16 %v355, %v352
      %v359 = vpack.c.bf16 %v356, %v353
      %v360 = vpack.c.bf16 %v357, %v354
      %v361 = vfloor.f32 %v262
      %v362 = vadd.f32 %v361, 1.0
      %v363 = vsub.f32 %v262, %v361
      %v364 = vsub.f32 1.0, %v363
      %vm365 = vcmp.ge.f32.partialorder %v361, 0.0
      %vm366 = vcmp.le.f32.partialorder %v361, 15.0
      %vm367 = vmand %vm365, %vm366
      %v368 = vmax.f32 %v361, 0.0
      %v369 = vmin.f32 %v368, 15.0
      %v370 = vcvt.f32.s32.to.zero.pseudo %v369
      %v371 = vsel %vm367, %v364, 0.0
      %v372 = vperm.slane %v370, 0
      %v373 = vperm.slane %v370, 1
      %v374 = vperm.slane %v370, 2
      %vm375 = vcmp.eq.s32.totalorder %v268, %v372
      %vm376 = vcmp.eq.s32.totalorder %v268, %v373
      %vm377 = vcmp.eq.s32.totalorder %v268, %v374
      %vm378 = vcmp.eq.s32.totalorder %v269, %v372
      %vm379 = vcmp.eq.s32.totalorder %v269, %v373
      %vm380 = vcmp.eq.s32.totalorder %v269, %v374
      %v381 = vsel %vm375, 1, 0
      %v382 = vsel %vm376, 1, 0
      %v383 = vsel %vm377, 1, 0
      %v384 = vsel %vm378, 1, 0
      %v385 = vsel %vm379, 1, 0
      %v386 = vsel %vm380, 1, 0
      %v387 = vcvt.s32.f32 %v381
      %v388 = vcvt.s32.f32 %v382
      %v389 = vcvt.s32.f32 %v383
      %v390 = vcvt.s32.f32 %v384
      %v391 = vcvt.s32.f32 %v385
      %v392 = vcvt.s32.f32 %v386
      %v394 = vperm.slane %v371, 0
      %v395 = vperm.slane %v371, 1
      %v396 = vperm.slane %v371, 2
      %v400 = vmul.f32 %v387, %v394
      %v401 = vmul.f32 %v388, %v395
      %v402 = vmul.f32 %v389, %v396
      %v403 = vmul.f32 %v390, %v394
      %v404 = vmul.f32 %v391, %v395
      %v405 = vmul.f32 %v392, %v396
      %vm406 = vcmp.ge.f32.partialorder %v362, 0.0
      %vm407 = vcmp.le.f32.partialorder %v362, 15.0
      %vm408 = vmand %vm406, %vm407
      %v409 = vmax.f32 %v362, 0.0
      %v410 = vmin.f32 %v409, 15.0
      %v411 = vcvt.f32.s32.to.zero.pseudo %v410
      %v412 = vsel %vm408, %v363, 0.0
      %v413 = vperm.slane %v411, 0
      %v414 = vperm.slane %v411, 1
      %v415 = vperm.slane %v411, 2
      %vm416 = vcmp.eq.s32.totalorder %v268, %v413
      %vm417 = vcmp.eq.s32.totalorder %v268, %v414
      %vm418 = vcmp.eq.s32.totalorder %v268, %v415
      %vm419 = vcmp.eq.s32.totalorder %v269, %v413
      %vm420 = vcmp.eq.s32.totalorder %v269, %v414
      %vm421 = vcmp.eq.s32.totalorder %v269, %v415
      %v422 = vsel %vm416, 1, 0
      %v423 = vsel %vm417, 1, 0
      %v424 = vsel %vm418, 1, 0
      %v425 = vsel %vm419, 1, 0
      %v426 = vsel %vm420, 1, 0
      %v427 = vsel %vm421, 1, 0
      %v428 = vcvt.s32.f32 %v422
      %v429 = vcvt.s32.f32 %v423
      %v430 = vcvt.s32.f32 %v424
      %v431 = vcvt.s32.f32 %v425
      %v432 = vcvt.s32.f32 %v426
      %v433 = vcvt.s32.f32 %v427
      %v435 = vperm.slane %v412, 0
      %v436 = vperm.slane %v412, 1
      %v437 = vperm.slane %v412, 2
      %v441 = vmul.f32 %v428, %v435
      %v442 = vmul.f32 %v429, %v436
      %v443 = vmul.f32 %v430, %v437
      %v444 = vmul.f32 %v431, %v435
      %v445 = vmul.f32 %v432, %v436
      %v446 = vmul.f32 %v433, %v437
      %v447 = vadd.f32 %v400, %v441
      %v448 = vadd.f32 %v401, %v442
      %v449 = vadd.f32 %v402, %v443
      %v450 = vadd.f32 %v403, %v444
      %v451 = vadd.f32 %v404, %v445
      %v452 = vadd.f32 %v405, %v446
      %v453 = vld [vmem:[%s231] sm:$0xf]
      %v454 = vld [vmem:[%s231 + $0x4] sm:$0xf]
      %v455 = vld [vmem:[%s231 + $0x8] sm:$0xf]
      %v456 = vld [vmem:[%s231 + $0xc] sm:$0xf]
      %v457 = vld [vmem:[%s231 + $0x10] sm:$0xf]
      %v458 = vld [vmem:[%s231 + $0x14] sm:$0xf]
      %v465 = vunpack.c.l.b16 %v453
      %v466 = vunpack.c.l.b16 %v454
      %v467 = vunpack.c.l.b16 %v455
      %v468 = vunpack.c.l.b16 %v456
      %v469 = vunpack.c.l.b16 %v457
      %v470 = vunpack.c.l.b16 %v458
      %v471 = vpack.c.b16 %v466, %v465
      %v472 = vpack.c.b16 %v468, %v467
      %v473 = vpack.c.b16 %v470, %v469
      %vm474 = vcmask 130048
      %v476 = vsel %vm474, %v471, 0
      %v479 = vsel %vm474, %v472, 0
      %v482 = vsel %vm474, %v473, 0
      %484 = vmatpush.bf16.msra.mxu0 0
      %485 = vmatpush.bf16.msra.mxu0 0
      %486 = vmatpush.bf16.msra.mxu0 0
      %487 = vmatpush.bf16.msra.mxu0 0
      %488 = vmatpush.bf16.msra.mxu0 0
      %489 = vmatpush.bf16.msra.mxu0 0
      %490 = vmatpush.bf16.msra.mxu0 0
      %491 = vmatpush.bf16.msra.mxu0 %v358
      %492 = vmatmul.bf16.gmra.mxu0 %v476
      %v493 = vpop.f32.mrf.mxu0
      %v494 = vadd.f32 0.0, %v493
      %v495 = vpop.f32.mrf.mxu0
      %v496 = vadd.f32 0.0, %v495
      %497 = vmatmul.bf16.gmra.mxu0 %v479
      %v498 = vpop.f32.mrf.mxu0
      %v499 = vadd.f32 0.0, %v498
      %v500 = vpop.f32.mrf.mxu0
      %v501 = vadd.f32 0.0, %v500
      %502 = vmatmul.bf16.gmra.mxu0 %v482
      %v503 = vpop.f32.mrf.mxu0
      %v504 = vadd.f32 0.0, %v503
      %v505 = vpop.f32.mrf.mxu0
      %v506 = vadd.f32 0.0, %v505
      %507 = vdwg.mxu0
      %508 = vmatpush.bf16.msra.mxu0 0
      %509 = vmatpush.bf16.msra.mxu0 0
      %510 = vmatpush.bf16.msra.mxu0 0
      %511 = vmatpush.bf16.msra.mxu0 0
      %512 = vmatpush.bf16.msra.mxu0 0
      %513 = vmatpush.bf16.msra.mxu0 0
      %514 = vmatpush.bf16.msra.mxu0 0
      %515 = vmatpush.bf16.msra.mxu0 %v359
      %516 = vmatmul.bf16.gmra.mxu0 %v476
      %v517 = vpop.f32.mrf.mxu0
      %v518 = vadd.f32 0.0, %v517
      %v519 = vpop.f32.mrf.mxu0
      %v520 = vadd.f32 0.0, %v519
      %521 = vmatmul.bf16.gmra.mxu0 %v479
      %v522 = vpop.f32.mrf.mxu0
      %v523 = vadd.f32 0.0, %v522
      %v524 = vpop.f32.mrf.mxu0
      %v525 = vadd.f32 0.0, %v524
      %526 = vmatmul.bf16.gmra.mxu0 %v482
      %v527 = vpop.f32.mrf.mxu0
      %v528 = vadd.f32 0.0, %v527
      %v529 = vpop.f32.mrf.mxu0
      %v530 = vadd.f32 0.0, %v529
      %531 = vdwg.mxu0
      %532 = vmatpush.bf16.msra.mxu0 0
      %533 = vmatpush.bf16.msra.mxu0 0
      %534 = vmatpush.bf16.msra.mxu0 0
      %535 = vmatpush.bf16.msra.mxu0 0
      %536 = vmatpush.bf16.msra.mxu0 0
      %537 = vmatpush.bf16.msra.mxu0 0
      %538 = vmatpush.bf16.msra.mxu0 0
      %539 = vmatpush.bf16.msra.mxu0 %v360
      %540 = vmatmul.bf16.gmra.mxu0 %v476
      %v541 = vpop.f32.mrf.mxu0
      %v542 = vadd.f32 0.0, %v541
      %v543 = vpop.f32.mrf.mxu0
      %v544 = vadd.f32 0.0, %v543
      %545 = vmatmul.bf16.gmra.mxu0 %v479
      %v546 = vpop.f32.mrf.mxu0
      %v547 = vadd.f32 0.0, %v546
      %v548 = vpop.f32.mrf.mxu0
      %v549 = vadd.f32 0.0, %v548
      %550 = vmatmul.bf16.gmra.mxu0 %v482
      %v551 = vpop.f32.mrf.mxu0
      %v552 = vadd.f32 0.0, %v551
      %v553 = vpop.f32.mrf.mxu0
      %v554 = vadd.f32 0.0, %v553
      %555 = vdwg.mxu0
      %v556 = vmul.f32 %v494, %v447
      %v557 = vmul.f32 %v518, %v448
      %v558 = vmul.f32 %v542, %v449
      %v559 = vmul.f32 %v496, %v450
      %v560 = vmul.f32 %v520, %v451
      %v561 = vmul.f32 %v544, %v452
      %v562 = vmul.f32 %v499, %v447
      %v563 = vmul.f32 %v523, %v448
      %v564 = vmul.f32 %v547, %v449
      %v565 = vmul.f32 %v501, %v450
      %v566 = vmul.f32 %v525, %v451
      %v567 = vmul.f32 %v549, %v452
      %v568 = vmul.f32 %v504, %v447
      %v569 = vmul.f32 %v528, %v448
      %v570 = vmul.f32 %v552, %v449
      %v571 = vmul.f32 %v506, %v450
      %v572 = vmul.f32 %v530, %v451
      %v573 = vmul.f32 %v554, %v452
      %v574 = vadd.f32 %v556, %v559
      %v575 = vrot.slane %v574, 4
      %v576 = vadd.f32 %v574, %v575
      %v577 = vrot.slane %v576, 2
      %v578 = vadd.f32 %v576, %v577
      %v579 = vrot.slane %v578, 1
      %v580 = vadd.f32 %v578, %v579
      %v581 = vadd.f32 %v557, %v560
      %v582 = vrot.slane %v581, 4
      %v583 = vadd.f32 %v581, %v582
      %v584 = vrot.slane %v583, 2
      %v585 = vadd.f32 %v583, %v584
      %v586 = vrot.slane %v585, 1
      %v587 = vadd.f32 %v585, %v586
      %v588 = vadd.f32 %v558, %v561
      %v589 = vrot.slane %v588, 4
      %v590 = vadd.f32 %v588, %v589
      %v591 = vrot.slane %v590, 2
      %v592 = vadd.f32 %v590, %v591
      %v593 = vrot.slane %v592, 1
      %v594 = vadd.f32 %v592, %v593
      %v595 = vadd.f32 %v562, %v565
      %v596 = vrot.slane %v595, 4
      %v597 = vadd.f32 %v595, %v596
      %v598 = vrot.slane %v597, 2
      %v599 = vadd.f32 %v597, %v598
      %v600 = vrot.slane %v599, 1
      %v601 = vadd.f32 %v599, %v600
      %v602 = vadd.f32 %v563, %v566
      %v603 = vrot.slane %v602, 4
      %v604 = vadd.f32 %v602, %v603
      %v605 = vrot.slane %v604, 2
      %v606 = vadd.f32 %v604, %v605
      %v607 = vrot.slane %v606, 1
      %v608 = vadd.f32 %v606, %v607
      %v609 = vadd.f32 %v564, %v567
      %v610 = vrot.slane %v609, 4
      %v611 = vadd.f32 %v609, %v610
      %v612 = vrot.slane %v611, 2
      %v613 = vadd.f32 %v611, %v612
      %v614 = vrot.slane %v613, 1
      %v615 = vadd.f32 %v613, %v614
      %v616 = vadd.f32 %v568, %v571
      %v617 = vrot.slane %v616, 4
      %v618 = vadd.f32 %v616, %v617
      %v619 = vrot.slane %v618, 2
      %v620 = vadd.f32 %v618, %v619
      %v621 = vrot.slane %v620, 1
      %v622 = vadd.f32 %v620, %v621
      %v623 = vadd.f32 %v569, %v572
      %v624 = vrot.slane %v623, 4
      %v625 = vadd.f32 %v623, %v624
      %v626 = vrot.slane %v625, 2
      %v627 = vadd.f32 %v625, %v626
      %v628 = vrot.slane %v627, 1
      %v629 = vadd.f32 %v627, %v628
      %v630 = vadd.f32 %v570, %v573
      %v631 = vrot.slane %v630, 4
      %v632 = vadd.f32 %v630, %v631
      %v633 = vrot.slane %v632, 2
      %v634 = vadd.f32 %v632, %v633
      %v635 = vrot.slane %v634, 1
      %v636 = vadd.f32 %v634, %v635
      %v646 = vrot.slane %v587, 4
      %v647 = vrot.slane %v608, 4
      %v648 = vrot.slane %v629, 4
      %vm649 = vcmask 1043456
      %v650 = vsel %vm649, %v580, %v646
      %v651 = vsel %vm649, %v601, %v647
      %v652 = vsel %vm649, %v622, %v648
      %v653 = vrot.slane %v651, 7
      %vm654 = vcmask 1041409
      %v655 = vsel %vm654, %v653, %v650
      %vm656 = vcmask 1045509
      %v657 = vsel %vm656, %v653, %v655
      %v658 = vrot.slane %v652, 6
      %vm659 = vcmask 1042434
      %v660 = vsel %vm659, %v658, %v657
      %vm661 = vcmask 1046534
      %v662 = vsel %vm661, %v658, %v660
      %v663 = vrot.slane %v615, 7
      %v664 = vsel %vm654, %v663, %v594
      %v665 = vsel %vm656, %v663, %v664
      %v666 = vrot.slane %v636, 6
      %v667 = vsel %vm659, %v666, %v665
      %v668 = vsel %vm661, %v666, %v667
      %671 = vst [vmem:[%s258] sm:$0x77] %v662
      %672 = vst [vmem:[%s258 + $0x8] sm:$0x7] %v668
      %s673 = smul.u32 3, %s19
      %p674 = scmp.lt.s32.totalorder %s18, 1
      %s675 = scalar_select %p674, %s18, 1
      %p676 = scmp.lt.s32.totalorder %s673, 2
      %s677 = scalar_select %p676, %s673, 2
      %s678 = smul.addr %s675, 3
      %s679 = sadd.s32 %s677, %s678
      %s680 = smul.addr %s679, 4
      %s681 = scalar_lea.vmem %s3, %s680
      // Predicated region
      $region33: #{tpu_custom_call.1} parent=31 // pred_check
        %p682 = pneg %p128
      $region34: #{tpu_custom_call.1} parent=31 // pred_check_branch
        %684 = sbr.rel (%p682) target = $region36
      $region35: #{tpu_custom_call.1} parent=31 // pred_region
        %s685 = smul.u32 3, %s19
      $region36: #{tpu_custom_call.1} parent=31 // pred_fallthru
        _
    $region32: #{tpu_custom_call.1} parent=5 // pred_fallthru
      _
    %p686 = scmp.le.s32.totalorder 2, %s9
    // Predicated region
    $region37: #{tpu_custom_call.1} parent=5 // pred_check
      %p687 = pneg %p686
    $region38: #{tpu_custom_call.1} parent=5 // pred_check_branch
      %689 = sbr.rel (%p687) target = $region40
    $region39: #{tpu_custom_call.1} parent=5 // pred_region
      %s690 = ssub.s32 %s9, 2
      // Predicated region
      $region41: #{tpu_custom_call.1} parent=39 // pred_check
        %p691 = pneg %p134
      $region42: #{tpu_custom_call.1} parent=39 // pred_check_branch
        %693 = sbr.rel (%p691) target = $region44
      $region43: #{tpu_custom_call.1} parent=39 // pred_region
        %s694 = smul.u32 3, %s21
        %p695 = scmp.lt.s32.totalorder %s20, 1
        %s696 = scalar_select %p695, %s20, 1
        %p697 = scmp.lt.s32.totalorder %s694, 2
        %s698 = scalar_select %p697, %s694, 2
        %s699 = smul.addr %s696, 3
        %s700 = sadd.s32 %s698, %s699
        %s701 = smul.addr %s700, 4
        %s702 = scalar_lea.vmem %s3, %s701
      $region44: #{tpu_custom_call.1} parent=39 // pred_fallthru
        _
    $region40: #{tpu_custom_call.1} parent=5 // pred_fallthru
      _
  $region6: #{tpu_custom_call.1} parent=0 // loop_footer
    %s13 = sadd.s32 1, %s9
  $region7: #{tpu_custom_call.1} parent=0 // loop_footer_branch
    %8 = sbr.rel target = $region3
  $region8: #{tpu_custom_call.1} parent=0 // loop_exit
    _

</llo_original>
